<compile_context>
chip_gen: v7x
topology: tpu7x:2x2x1
jax: 0.10.0
libtpu: 0.0.40
codegen_flags: <defaults>
</compile_context>

<pallas_src>
import functools
import math

import jax
import jax.numpy as jnp
from jax import lax
from jax.experimental import pallas as pl
from jax.experimental.pallas import tpu as pltpu

VOCAB = 10000
EMBED_DIM = 32

_DEFAULT_TILE = 1024  # tokens gathered per grid step


def _round_up(x, m):
    return (x + m - 1) // m * m


def _embedding_gather_kernel(idx_ref, table_ref, out_ref, *, pack):
    """Gather embedding rows for one tile of tokens.

    idx_ref:   SMEM (n_pad,) int32 token ids (scalar prefetch).
    table_ref: VMEM (V, D) f32 — whole table, resident across all grid steps.
    out_ref:   VMEM (T//pack, pack*D) f32 — `pack` consecutive tokens laid side
               by side per 128-lane row (free row-major view of (T, D)).
    """
    rows_per_tile = out_ref.shape[0]          # T // pack
    d = table_ref.shape[1]
    v_max = table_ref.shape[0] - 1
    tok_per_tile = rows_per_tile * pack       # T
    tok_per_blk = 8 * pack                    # tokens per (8, pack*D) store block
    base = pl.program_id(0) * tok_per_tile

    def body(blk, carry):
        row0 = pl.multiple_of(blk * 8, 8)     # aligned sublane offset of this block
        tok0 = base + blk * tok_per_blk
        # For each lane group c, gather 8 table rows into a register-resident
        # (8, D) block and issue a single 8-sublane store at static lane
        # offset c*D.  With pack*D == 128 the out block (and its write-back
        # DMA) is fully lane-dense.
        for c in range(pack):
            rows = [
                table_ref[pl.ds(jnp.clip(idx_ref[tok0 + r * pack + c], 0, v_max), 1), :]
                for r in range(8)
            ]
            col = jnp.concatenate(rows, axis=0)                      # (8, D)
            out_ref[pl.ds(row0, 8), c * d:(c + 1) * d] = col.astype(out_ref.dtype)
        return carry

    lax.fori_loop(0, rows_per_tile // 8, body, 0)


def embedding_forward(indices, table, *, tile_tokens=_DEFAULT_TILE):
    """indices: int array (any shape) of ids in [0, V); table: (V, D) -> (*indices.shape, D)."""
    idx_shape = indices.shape
    n_tok = math.prod(idx_shape)
    V, D = table.shape

    # Lane packing: `pack` consecutive tokens share one 128-lane output row.
    pack = (128 // D) if (D < 128 and 128 % D == 0) else 1
    tok_per_blk = 8 * pack                      # tokens per (8, pack*D) store

    T = min(tile_tokens, _round_up(n_tok, tok_per_blk))
    T = _round_up(T, tok_per_blk)
    n_pad = _round_up(n_tok, T)
    n_tiles = n_pad // T

    flat_idx = indices.reshape(n_tok).astype(jnp.int32)
    if n_pad != n_tok:
        flat_idx = jnp.pad(flat_idx, (0, n_pad - n_tok))  # pad slots gather row 0

    grid_spec = pltpu.PrefetchScalarGridSpec(
        num_scalar_prefetch=1,  # flat ids -> SMEM, read scalar-by-scalar in-kernel
        grid=(n_tiles,),
        in_specs=[
            # Whole-table block with a constant index_map: DMA'd once, kept
            # resident in VMEM for every grid step (no per-step re-fetch).
            pl.BlockSpec((V, D), lambda i, idx_ref: (0, 0)),
        ],
        # Lane-dense output block: pack*D == 128 lanes wide when D divides 128.
        out_specs=pl.BlockSpec((T // pack, pack * D), lambda i, idx_ref: (i, 0)),
    )

    itemsize = jnp.dtype(table.dtype).itemsize
    cost = pl.CostEstimate(
        flops=0,
        transcendentals=0,
        bytes_accessed=V * D * itemsize + n_pad * D * itemsize + n_pad * 4,
    )

    out_packed = pl.pallas_call(
        functools.partial(_embedding_gather_kernel, pack=pack),
        out_shape=jax.ShapeDtypeStruct((n_pad // pack, pack * D), table.dtype),
        grid_spec=grid_spec,
        compiler_params=pltpu.CompilerParams(
            # Independent token tiles -> let a 2-TC chip (v7x) shard the grid.
            dimension_semantics=("parallel",),
            # Resident table (2 x ~5.1 MiB lane-padded) + small output tiles.
            vmem_limit_bytes=32 * 1024 * 1024,
        ),
        cost_estimate=cost,
    )(flat_idx, table)

    # (n_pad//pack, pack*D) -> (n_pad, D) is a free row-major view; fold the
    # tail slice into the final reshape so XLA fuses it.
    out = out_packed.reshape(n_pad, D)
    if n_pad != n_tok:
        out = out[:n_tok]
    return out.reshape(*idx_shape, D)


if __name__ == "__main__":
    key = jax.random.PRNGKey(0)
    k_tab, k_idx = jax.random.split(key)

    # nn.Embedding default init: weight ~ N(0, 1), shape (10000, embedding_dim)
    table = jax.random.normal(k_tab, (VOCAB, EMBED_DIM), dtype=jnp.float32)

    # Small input consistent with the module's forward: batch=2, seq=8 token ids
    indices = jax.random.randint(k_idx, (2, 8), 0, VOCAB, dtype=jnp.int32)

    out = embedding_forward(indices, table)
    out = jax.block_until_ready(out)

    # Reference check against plain JAX gather (semantics of nn.Embedding)
    ref = table[indices]
    assert out.shape == (2, 8, EMBED_DIM)
    assert out.dtype == jnp.float32
    assert jnp.allclose(out, ref), "Pallas embedding mismatch vs reference gather"

    print("KERNEL_OK")
</pallas_src>

<mosaic_0001>
module attributes {stable_mosaic.version = 11 : i64} {
  func.func @_embedding_gather_kernel(%arg0: i32, %arg1: memref<32xi32, #tpu.memory_space<smem>>, %arg2: memref<10000x32xf32, #tpu.memory_space<vmem>>, %arg3: memref<8x128xf32, #tpu.memory_space<vmem>>) attributes {dimension_semantics = [#tpu.dimension_semantics<parallel>], iteration_bounds = array<i64: 1>, scalar_prefetch = 1 : i64, scratch_operands = 0 : i64, tpu.core_type = #tpu.core_type<tc>, window_params = [{pipeline_mode = #tpu.pipeline_mode<synchronous>, transform_indices = @transform_0, window_bounds = array<i64: 10000, 32>}, {transform_indices = @transform_1, window_bounds = array<i64: 8, 128>}]} {
    %c32_i32 = arith.constant 32 : i32
    %0 = arith.muli %arg0, %c32_i32 : i32
    %c0_i32 = arith.constant 0 : i32
    %c8_i32 = arith.constant 8 : i32
    %1 = arith.muli %c0_i32, %c8_i32 : i32
    %2 = tpu.assume_multiple %1, 8 : i32
    %c32_i32_0 = arith.constant 32 : i32
    %3 = arith.muli %c0_i32, %c32_i32_0 : i32
    %4 = arith.addi %0, %3 : i32
    %c0_i32_1 = arith.constant 0 : i32
    %5 = arith.addi %4, %c0_i32_1 : i32
    %c0_i32_2 = arith.constant 0 : i32
    %6 = arith.addi %5, %c0_i32_2 : i32
    %7 = arith.index_cast %6 : i32 to index
    %8 = memref.load %arg1[%7] : memref<32xi32, #tpu.memory_space<smem>>
    %c0_i32_3 = arith.constant 0 : i32
    %c9999_i32 = arith.constant 9999 : i32
    %9 = arith.maxsi %c0_i32_3, %8 : i32
    %10 = arith.minsi %c9999_i32, %9 : i32
    %11 = arith.index_cast %10 : i32 to index
    %c0 = arith.constant 0 : index
    %12 = vector.load %arg2[%11, %c0] : memref<10000x32xf32, #tpu.memory_space<vmem>>, vector<1x32xf32>
    %c4_i32 = arith.constant 4 : i32
    %13 = arith.addi %4, %c4_i32 : i32
    %c0_i32_4 = arith.constant 0 : i32
    %14 = arith.addi %13, %c0_i32_4 : i32
    %15 = arith.index_cast %14 : i32 to index
    %16 = memref.load %arg1[%15] : memref<32xi32, #tpu.memory_space<smem>>
    %c0_i32_5 = arith.constant 0 : i32
    %c9999_i32_6 = arith.constant 9999 : i32
    %17 = arith.maxsi %c0_i32_5, %16 : i32
    %18 = arith.minsi %c9999_i32_6, %17 : i32
    %19 = arith.index_cast %18 : i32 to index
    %c0_7 = arith.constant 0 : index
    %20 = vector.load %arg2[%19, %c0_7] : memref<10000x32xf32, #tpu.memory_space<vmem>>, vector<1x32xf32>
    %c8_i32_8 = arith.constant 8 : i32
    %21 = arith.addi %4, %c8_i32_8 : i32
    %c0_i32_9 = arith.constant 0 : i32
    %22 = arith.addi %21, %c0_i32_9 : i32
    %23 = arith.index_cast %22 : i32 to index
    %24 = memref.load %arg1[%23] : memref<32xi32, #tpu.memory_space<smem>>
    %c0_i32_10 = arith.constant 0 : i32
    %c9999_i32_11 = arith.constant 9999 : i32
    %25 = arith.maxsi %c0_i32_10, %24 : i32
    %26 = arith.minsi %c9999_i32_11, %25 : i32
    %27 = arith.index_cast %26 : i32 to index
    %c0_12 = arith.constant 0 : index
    %28 = vector.load %arg2[%27, %c0_12] : memref<10000x32xf32, #tpu.memory_space<vmem>>, vector<1x32xf32>
    %c12_i32 = arith.constant 12 : i32
    %29 = arith.addi %4, %c12_i32 : i32
    %c0_i32_13 = arith.constant 0 : i32
    %30 = arith.addi %29, %c0_i32_13 : i32
    %31 = arith.index_cast %30 : i32 to index
    %32 = memref.load %arg1[%31] : memref<32xi32, #tpu.memory_space<smem>>
    %c0_i32_14 = arith.constant 0 : i32
    %c9999_i32_15 = arith.constant 9999 : i32
    %33 = arith.maxsi %c0_i32_14, %32 : i32
    %34 = arith.minsi %c9999_i32_15, %33 : i32
    %35 = arith.index_cast %34 : i32 to index
    %c0_16 = arith.constant 0 : index
    %36 = vector.load %arg2[%35, %c0_16] : memref<10000x32xf32, #tpu.memory_space<vmem>>, vector<1x32xf32>
    %c16_i32 = arith.constant 16 : i32
    %37 = arith.addi %4, %c16_i32 : i32
    %c0_i32_17 = arith.constant 0 : i32
    %38 = arith.addi %37, %c0_i32_17 : i32
    %39 = arith.index_cast %38 : i32 to index
    %40 = memref.load %arg1[%39] : memref<32xi32, #tpu.memory_space<smem>>
    %c0_i32_18 = arith.constant 0 : i32
    %c9999_i32_19 = arith.constant 9999 : i32
    %41 = arith.maxsi %c0_i32_18, %40 : i32
    %42 = arith.minsi %c9999_i32_19, %41 : i32
    %43 = arith.index_cast %42 : i32 to index
    %c0_20 = arith.constant 0 : index
    %44 = vector.load %arg2[%43, %c0_20] : memref<10000x32xf32, #tpu.memory_space<vmem>>, vector<1x32xf32>
    %c20_i32 = arith.constant 20 : i32
    %45 = arith.addi %4, %c20_i32 : i32
    %c0_i32_21 = arith.constant 0 : i32
    %46 = arith.addi %45, %c0_i32_21 : i32
    %47 = arith.index_cast %46 : i32 to index
    %48 = memref.load %arg1[%47] : memref<32xi32, #tpu.memory_space<smem>>
    %c0_i32_22 = arith.constant 0 : i32
    %c9999_i32_23 = arith.constant 9999 : i32
    %49 = arith.maxsi %c0_i32_22, %48 : i32
    %50 = arith.minsi %c9999_i32_23, %49 : i32
    %51 = arith.index_cast %50 : i32 to index
    %c0_24 = arith.constant 0 : index
    %52 = vector.load %arg2[%51, %c0_24] : memref<10000x32xf32, #tpu.memory_space<vmem>>, vector<1x32xf32>
    %c24_i32 = arith.constant 24 : i32
    %53 = arith.addi %4, %c24_i32 : i32
    %c0_i32_25 = arith.constant 0 : i32
    %54 = arith.addi %53, %c0_i32_25 : i32
    %55 = arith.index_cast %54 : i32 to index
    %56 = memref.load %arg1[%55] : memref<32xi32, #tpu.memory_space<smem>>
    %c0_i32_26 = arith.constant 0 : i32
    %c9999_i32_27 = arith.constant 9999 : i32
    %57 = arith.maxsi %c0_i32_26, %56 : i32
    %58 = arith.minsi %c9999_i32_27, %57 : i32
    %59 = arith.index_cast %58 : i32 to index
    %c0_28 = arith.constant 0 : index
    %60 = vector.load %arg2[%59, %c0_28] : memref<10000x32xf32, #tpu.memory_space<vmem>>, vector<1x32xf32>
    %c28_i32 = arith.constant 28 : i32
    %61 = arith.addi %4, %c28_i32 : i32
    %c0_i32_29 = arith.constant 0 : i32
    %62 = arith.addi %61, %c0_i32_29 : i32
    %63 = arith.index_cast %62 : i32 to index
    %64 = memref.load %arg1[%63] : memref<32xi32, #tpu.memory_space<smem>>
    %c0_i32_30 = arith.constant 0 : i32
    %c9999_i32_31 = arith.constant 9999 : i32
    %65 = arith.maxsi %c0_i32_30, %64 : i32
    %66 = arith.minsi %c9999_i32_31, %65 : i32
    %67 = arith.index_cast %66 : i32 to index
    %c0_32 = arith.constant 0 : index
    %68 = vector.load %arg2[%67, %c0_32] : memref<10000x32xf32, #tpu.memory_space<vmem>>, vector<1x32xf32>
    %69 = tpu.concatenate %12, %20, %28, %36, %44, %52, %60, %68 in 0 : vector<1x32xf32>, vector<1x32xf32>, vector<1x32xf32>, vector<1x32xf32>, vector<1x32xf32>, vector<1x32xf32>, vector<1x32xf32>, vector<1x32xf32> -> vector<8x32xf32>
    %70 = arith.index_cast %2 : i32 to index
    %c0_33 = arith.constant 0 : index
    %71 = vector.load %arg3[%70, %c0_33] : memref<8x128xf32, #tpu.memory_space<vmem>>, vector<8x32xf32>
    tpu.vector_store %arg3[%70, %c0_33], %69 {strides = array<i32>} : memref<8x128xf32, #tpu.memory_space<vmem>>, vector<8x32xf32>,
    %c0_i32_34 = arith.constant 0 : i32
    %72 = arith.addi %4, %c0_i32_34 : i32
    %c1_i32 = arith.constant 1 : i32
    %73 = arith.addi %72, %c1_i32 : i32
    %74 = arith.index_cast %73 : i32 to index
    %75 = memref.load %arg1[%74] : memref<32xi32, #tpu.memory_space<smem>>
    %c0_i32_35 = arith.constant 0 : i32
    %c9999_i32_36 = arith.constant 9999 : i32
    %76 = arith.maxsi %c0_i32_35, %75 : i32
    %77 = arith.minsi %c9999_i32_36, %76 : i32
    %78 = arith.index_cast %77 : i32 to index
    %c0_37 = arith.constant 0 : index
    %79 = vector.load %arg2[%78, %c0_37] : memref<10000x32xf32, #tpu.memory_space<vmem>>, vector<1x32xf32>
    %c4_i32_38 = arith.constant 4 : i32
    %80 = arith.addi %4, %c4_i32_38 : i32
    %c1_i32_39 = arith.constant 1 : i32
    %81 = arith.addi %80, %c1_i32_39 : i32
    %82 = arith.index_cast %81 : i32 to index
    %83 = memref.load %arg1[%82] : memref<32xi32, #tpu.memory_space<smem>>
    %c0_i32_40 = arith.constant 0 : i32
    %c9999_i32_41 = arith.constant 9999 : i32
    %84 = arith.maxsi %c0_i32_40, %83 : i32
    %85 = arith.minsi %c9999_i32_41, %84 : i32
    %86 = arith.index_cast %85 : i32 to index
    %c0_42 = arith.constant 0 : index
    %87 = vector.load %arg2[%86, %c0_42] : memref<10000x32xf32, #tpu.memory_space<vmem>>, vector<1x32xf32>
    %c8_i32_43 = arith.constant 8 : i32
    %88 = arith.addi %4, %c8_i32_43 : i32
    %c1_i32_44 = arith.constant 1 : i32
    %89 = arith.addi %88, %c1_i32_44 : i32
    %90 = arith.index_cast %89 : i32 to index
    %91 = memref.load %arg1[%90] : memref<32xi32, #tpu.memory_space<smem>>
    %c0_i32_45 = arith.constant 0 : i32
    %c9999_i32_46 = arith.constant 9999 : i32
    %92 = arith.maxsi %c0_i32_45, %91 : i32
    %93 = arith.minsi %c9999_i32_46, %92 : i32
    %94 = arith.index_cast %93 : i32 to index
    %c0_47 = arith.constant 0 : index
    %95 = vector.load %arg2[%94, %c0_47] : memref<10000x32xf32, #tpu.memory_space<vmem>>, vector<1x32xf32>
    %c12_i32_48 = arith.constant 12 : i32
    %96 = arith.addi %4, %c12_i32_48 : i32
    %c1_i32_49 = arith.constant 1 : i32
    %97 = arith.addi %96, %c1_i32_49 : i32
    %98 = arith.index_cast %97 : i32 to index
    %99 = memref.load %arg1[%98] : memref<32xi32, #tpu.memory_space<smem>>
    %c0_i32_50 = arith.constant 0 : i32
    %c9999_i32_51 = arith.constant 9999 : i32
    %100 = arith.maxsi %c0_i32_50, %99 : i32
    %101 = arith.minsi %c9999_i32_51, %100 : i32
    %102 = arith.index_cast %101 : i32 to index
    %c0_52 = arith.constant 0 : index
    %103 = vector.load %arg2[%102, %c0_52] : memref<10000x32xf32, #tpu.memory_space<vmem>>, vector<1x32xf32>
    %c16_i32_53 = arith.constant 16 : i32
    %104 = arith.addi %4, %c16_i32_53 : i32
    %c1_i32_54 = arith.constant 1 : i32
    %105 = arith.addi %104, %c1_i32_54 : i32
    %106 = arith.index_cast %105 : i32 to index
    %107 = memref.load %arg1[%106] : memref<32xi32, #tpu.memory_space<smem>>
    %c0_i32_55 = arith.constant 0 : i32
    %c9999_i32_56 = arith.constant 9999 : i32
    %108 = arith.maxsi %c0_i32_55, %107 : i32
    %109 = arith.minsi %c9999_i32_56, %108 : i32
    %110 = arith.index_cast %109 : i32 to index
    %c0_57 = arith.constant 0 : index
    %111 = vector.load %arg2[%110, %c0_57] : memref<10000x32xf32, #tpu.memory_space<vmem>>, vector<1x32xf32>
    %c20_i32_58 = arith.constant 20 : i32
    %112 = arith.addi %4, %c20_i32_58 : i32
    %c1_i32_59 = arith.constant 1 : i32
    %113 = arith.addi %112, %c1_i32_59 : i32
    %114 = arith.index_cast %113 : i32 to index
    %115 = memref.load %arg1[%114] : memref<32xi32, #tpu.memory_space<smem>>
    %c0_i32_60 = arith.constant 0 : i32
    %c9999_i32_61 = arith.constant 9999 : i32
    %116 = arith.maxsi %c0_i32_60, %115 : i32
    %117 = arith.minsi %c9999_i32_61, %116 : i32
    %118 = arith.index_cast %117 : i32 to index
    %c0_62 = arith.constant 0 : index
    %119 = vector.load %arg2[%118, %c0_62] : memref<10000x32xf32, #tpu.memory_space<vmem>>, vector<1x32xf32>
    %c24_i32_63 = arith.constant 24 : i32
    %120 = arith.addi %4, %c24_i32_63 : i32
    %c1_i32_64 = arith.constant 1 : i32
    %121 = arith.addi %120, %c1_i32_64 : i32
    %122 = arith.index_cast %121 : i32 to index
    %123 = memref.load %arg1[%122] : memref<32xi32, #tpu.memory_space<smem>>
    %c0_i32_65 = arith.constant 0 : i32
    %c9999_i32_66 = arith.constant 9999 : i32
    %124 = arith.maxsi %c0_i32_65, %123 : i32
    %125 = arith.minsi %c9999_i32_66, %124 : i32
    %126 = arith.index_cast %125 : i32 to index
    %c0_67 = arith.constant 0 : index
    %127 = vector.load %arg2[%126, %c0_67] : memref<10000x32xf32, #tpu.memory_space<vmem>>, vector<1x32xf32>
    %c28_i32_68 = arith.constant 28 : i32
    %128 = arith.addi %4, %c28_i32_68 : i32
    %c1_i32_69 = arith.constant 1 : i32
    %129 = arith.addi %128, %c1_i32_69 : i32
    %130 = arith.index_cast %129 : i32 to index
    %131 = memref.load %arg1[%130] : memref<32xi32, #tpu.memory_space<smem>>
    %c0_i32_70 = arith.constant 0 : i32
    %c9999_i32_71 = arith.constant 9999 : i32
    %132 = arith.maxsi %c0_i32_70, %131 : i32
    %133 = arith.minsi %c9999_i32_71, %132 : i32
    %134 = arith.index_cast %133 : i32 to index
    %c0_72 = arith.constant 0 : index
    %135 = vector.load %arg2[%134, %c0_72] : memref<10000x32xf32, #tpu.memory_space<vmem>>, vector<1x32xf32>
    %136 = tpu.concatenate %79, %87, %95, %103, %111, %119, %127, %135 in 0 : vector<1x32xf32>, vector<1x32xf32>, vector<1x32xf32>, vector<1x32xf32>, vector<1x32xf32>, vector<1x32xf32>, vector<1x32xf32>, vector<1x32xf32> -> vector<8x32xf32>
    %137 = arith.index_cast %2 : i32 to index
    %c32 = arith.constant 32 : index
    %138 = vector.load %arg3[%137, %c32] : memref<8x128xf32, #tpu.memory_space<vmem>>, vector<8x32xf32>
    tpu.vector_store %arg3[%137, %c32], %136 {strides = array<i32>} : memref<8x128xf32, #tpu.memory_space<vmem>>, vector<8x32xf32>,
    %c0_i32_73 = arith.constant 0 : i32
    %139 = arith.addi %4, %c0_i32_73 : i32
    %c2_i32 = arith.constant 2 : i32
    %140 = arith.addi %139, %c2_i32 : i32
    %141 = arith.index_cast %140 : i32 to index
    %142 = memref.load %arg1[%141] : memref<32xi32, #tpu.memory_space<smem>>
    %c0_i32_74 = arith.constant 0 : i32
    %c9999_i32_75 = arith.constant 9999 : i32
    %143 = arith.maxsi %c0_i32_74, %142 : i32
    %144 = arith.minsi %c9999_i32_75, %143 : i32
    %145 = arith.index_cast %144 : i32 to index
    %c0_76 = arith.constant 0 : index
    %146 = vector.load %arg2[%145, %c0_76] : memref<10000x32xf32, #tpu.memory_space<vmem>>, vector<1x32xf32>
    %c4_i32_77 = arith.constant 4 : i32
    %147 = arith.addi %4, %c4_i32_77 : i32
    %c2_i32_78 = arith.constant 2 : i32
    %148 = arith.addi %147, %c2_i32_78 : i32
    %149 = arith.index_cast %148 : i32 to index
    %150 = memref.load %arg1[%149] : memref<32xi32, #tpu.memory_space<smem>>
    %c0_i32_79 = arith.constant 0 : i32
    %c9999_i32_80 = arith.constant 9999 : i32
    %151 = arith.maxsi %c0_i32_79, %150 : i32
    %152 = arith.minsi %c9999_i32_80, %151 : i32
    %153 = arith.index_cast %152 : i32 to index
    %c0_81 = arith.constant 0 : index
    %154 = vector.load %arg2[%153, %c0_81] : memref<10000x32xf32, #tpu.memory_space<vmem>>, vector<1x32xf32>
    %c8_i32_82 = arith.constant 8 : i32
    %155 = arith.addi %4, %c8_i32_82 : i32
    %c2_i32_83 = arith.constant 2 : i32
    %156 = arith.addi %155, %c2_i32_83 : i32
    %157 = arith.index_cast %156 : i32 to index
    %158 = memref.load %arg1[%157] : memref<32xi32, #tpu.memory_space<smem>>
    %c0_i32_84 = arith.constant 0 : i32
    %c9999_i32_85 = arith.constant 9999 : i32
    %159 = arith.maxsi %c0_i32_84, %158 : i32
    %160 = arith.minsi %c9999_i32_85, %159 : i32
    %161 = arith.index_cast %160 : i32 to index
    %c0_86 = arith.constant 0 : index
    %162 = vector.load %arg2[%161, %c0_86] : memref<10000x32xf32, #tpu.memory_space<vmem>>, vector<1x32xf32>
    %c12_i32_87 = arith.constant 12 : i32
    %163 = arith.addi %4, %c12_i32_87 : i32
    %c2_i32_88 = arith.constant 2 : i32
    %164 = arith.addi %163, %c2_i32_88 : i32
    %165 = arith.index_cast %164 : i32 to index
    %166 = memref.load %arg1[%165] : memref<32xi32, #tpu.memory_space<smem>>
    %c0_i32_89 = arith.constant 0 : i32
    %c9999_i32_90 = arith.constant 9999 : i32
    %167 = arith.maxsi %c0_i32_89, %166 : i32
    %168 = arith.minsi %c9999_i32_90, %167 : i32
    %169 = arith.index_cast %168 : i32 to index
    %c0_91 = arith.constant 0 : index
    %170 = vector.load %arg2[%169, %c0_91] : memref<10000x32xf32, #tpu.memory_space<vmem>>, vector<1x32xf32>
    %c16_i32_92 = arith.constant 16 : i32
    %171 = arith.addi %4, %c16_i32_92 : i32
    %c2_i32_93 = arith.constant 2 : i32
    %172 = arith.addi %171, %c2_i32_93 : i32
    %173 = arith.index_cast %172 : i32 to index
    %174 = memref.load %arg1[%173] : memref<32xi32, #tpu.memory_space<smem>>
    %c0_i32_94 = arith.constant 0 : i32
    %c9999_i32_95 = arith.constant 9999 : i32
    %175 = arith.maxsi %c0_i32_94, %174 : i32
    %176 = arith.minsi %c9999_i32_95, %175 : i32
    %177 = arith.index_cast %176 : i32 to index
    %c0_96 = arith.constant 0 : index
    %178 = vector.load %arg2[%177, %c0_96] : memref<10000x32xf32, #tpu.memory_space<vmem>>, vector<1x32xf32>
    %c20_i32_97 = arith.constant 20 : i32
    %179 = arith.addi %4, %c20_i32_97 : i32
    %c2_i32_98 = arith.constant 2 : i32
    %180 = arith.addi %179, %c2_i32_98 : i32
    %181 = arith.index_cast %180 : i32 to index
    %182 = memref.load %arg1[%181] : memref<32xi32, #tpu.memory_space<smem>>
    %c0_i32_99 = arith.constant 0 : i32
    %c9999_i32_100 = arith.constant 9999 : i32
    %183 = arith.maxsi %c0_i32_99, %182 : i32
    %184 = arith.minsi %c9999_i32_100, %183 : i32
    %185 = arith.index_cast %184 : i32 to index
    %c0_101 = arith.constant 0 : index
    %186 = vector.load %arg2[%185, %c0_101] : memref<10000x32xf32, #tpu.memory_space<vmem>>, vector<1x32xf32>
    %c24_i32_102 = arith.constant 24 : i32
    %187 = arith.addi %4, %c24_i32_102 : i32
    %c2_i32_103 = arith.constant 2 : i32
    %188 = arith.addi %187, %c2_i32_103 : i32
    %189 = arith.index_cast %188 : i32 to index
    %190 = memref.load %arg1[%189] : memref<32xi32, #tpu.memory_space<smem>>
    %c0_i32_104 = arith.constant 0 : i32
    %c9999_i32_105 = arith.constant 9999 : i32
    %191 = arith.maxsi %c0_i32_104, %190 : i32
    %192 = arith.minsi %c9999_i32_105, %191 : i32
    %193 = arith.index_cast %192 : i32 to index
    %c0_106 = arith.constant 0 : index
    %194 = vector.load %arg2[%193, %c0_106] : memref<10000x32xf32, #tpu.memory_space<vmem>>, vector<1x32xf32>
    %c28_i32_107 = arith.constant 28 : i32
    %195 = arith.addi %4, %c28_i32_107 : i32
    %c2_i32_108 = arith.constant 2 : i32
    %196 = arith.addi %195, %c2_i32_108 : i32
    %197 = arith.index_cast %196 : i32 to index
    %198 = memref.load %arg1[%197] : memref<32xi32, #tpu.memory_space<smem>>
    %c0_i32_109 = arith.constant 0 : i32
    %c9999_i32_110 = arith.constant 9999 : i32
    %199 = arith.maxsi %c0_i32_109, %198 : i32
    %200 = arith.minsi %c9999_i32_110, %199 : i32
    %201 = arith.index_cast %200 : i32 to index
    %c0_111 = arith.constant 0 : index
    %202 = vector.load %arg2[%201, %c0_111] : memref<10000x32xf32, #tpu.memory_space<vmem>>, vector<1x32xf32>
    %203 = tpu.concatenate %146, %154, %162, %170, %178, %186, %194, %202 in 0 : vector<1x32xf32>, vector<1x32xf32>, vector<1x32xf32>, vector<1x32xf32>, vector<1x32xf32>, vector<1x32xf32>, vector<1x32xf32>, vector<1x32xf32> -> vector<8x32xf32>
    %204 = arith.index_cast %2 : i32 to index
    %c64 = arith.constant 64 : index
    %205 = vector.load %arg3[%204, %c64] : memref<8x128xf32, #tpu.memory_space<vmem>>, vector<8x32xf32>
    tpu.vector_store %arg3[%204, %c64], %203 {strides = array<i32>} : memref<8x128xf32, #tpu.memory_space<vmem>>, vector<8x32xf32>,
    %c0_i32_112 = arith.constant 0 : i32
    %206 = arith.addi %4, %c0_i32_112 : i32
    %c3_i32 = arith.constant 3 : i32
    %207 = arith.addi %206, %c3_i32 : i32
    %208 = arith.index_cast %207 : i32 to index
    %209 = memref.load %arg1[%208] : memref<32xi32, #tpu.memory_space<smem>>
    %c0_i32_113 = arith.constant 0 : i32
    %c9999_i32_114 = arith.constant 9999 : i32
    %210 = arith.maxsi %c0_i32_113, %209 : i32
    %211 = arith.minsi %c9999_i32_114, %210 : i32
    %212 = arith.index_cast %211 : i32 to index
    %c0_115 = arith.constant 0 : index
    %213 = vector.load %arg2[%212, %c0_115] : memref<10000x32xf32, #tpu.memory_space<vmem>>, vector<1x32xf32>
    %c4_i32_116 = arith.constant 4 : i32
    %214 = arith.addi %4, %c4_i32_116 : i32
    %c3_i32_117 = arith.constant 3 : i32
    %215 = arith.addi %214, %c3_i32_117 : i32
    %216 = arith.index_cast %215 : i32 to index
    %217 = memref.load %arg1[%216] : memref<32xi32, #tpu.memory_space<smem>>
    %c0_i32_118 = arith.constant 0 : i32
    %c9999_i32_119 = arith.constant 9999 : i32
    %218 = arith.maxsi %c0_i32_118, %217 : i32
    %219 = arith.minsi %c9999_i32_119, %218 : i32
    %220 = arith.index_cast %219 : i32 to index
    %c0_120 = arith.constant 0 : index
    %221 = vector.load %arg2[%220, %c0_120] : memref<10000x32xf32, #tpu.memory_space<vmem>>, vector<1x32xf32>
    %c8_i32_121 = arith.constant 8 : i32
    %222 = arith.addi %4, %c8_i32_121 : i32
    %c3_i32_122 = arith.constant 3 : i32
    %223 = arith.addi %222, %c3_i32_122 : i32
    %224 = arith.index_cast %223 : i32 to index
    %225 = memref.load %arg1[%224] : memref<32xi32, #tpu.memory_space<smem>>
    %c0_i32_123 = arith.constant 0 : i32
    %c9999_i32_124 = arith.constant 9999 : i32
    %226 = arith.maxsi %c0_i32_123, %225 : i32
    %227 = arith.minsi %c9999_i32_124, %226 : i32
    %228 = arith.index_cast %227 : i32 to index
    %c0_125 = arith.constant 0 : index
    %229 = vector.load %arg2[%228, %c0_125] : memref<10000x32xf32, #tpu.memory_space<vmem>>, vector<1x32xf32>
    %c12_i32_126 = arith.constant 12 : i32
    %230 = arith.addi %4, %c12_i32_126 : i32
    %c3_i32_127 = arith.constant 3 : i32
    %231 = arith.addi %230, %c3_i32_127 : i32
    %232 = arith.index_cast %231 : i32 to index
    %233 = memref.load %arg1[%232] : memref<32xi32, #tpu.memory_space<smem>>
    %c0_i32_128 = arith.constant 0 : i32
    %c9999_i32_129 = arith.constant 9999 : i32
    %234 = arith.maxsi %c0_i32_128, %233 : i32
    %235 = arith.minsi %c9999_i32_129, %234 : i32
    %236 = arith.index_cast %235 : i32 to index
    %c0_130 = arith.constant 0 : index
    %237 = vector.load %arg2[%236, %c0_130] : memref<10000x32xf32, #tpu.memory_space<vmem>>, vector<1x32xf32>
    %c16_i32_131 = arith.constant 16 : i32
    %238 = arith.addi %4, %c16_i32_131 : i32
    %c3_i32_132 = arith.constant 3 : i32
    %239 = arith.addi %238, %c3_i32_132 : i32
    %240 = arith.index_cast %239 : i32 to index
    %241 = memref.load %arg1[%240] : memref<32xi32, #tpu.memory_space<smem>>
    %c0_i32_133 = arith.constant 0 : i32
    %c9999_i32_134 = arith.constant 9999 : i32
    %242 = arith.maxsi %c0_i32_133, %241 : i32
    %243 = arith.minsi %c9999_i32_134, %242 : i32
    %244 = arith.index_cast %243 : i32 to index
    %c0_135 = arith.constant 0 : index
    %245 = vector.load %arg2[%244, %c0_135] : memref<10000x32xf32, #tpu.memory_space<vmem>>, vector<1x32xf32>
    %c20_i32_136 = arith.constant 20 : i32
    %246 = arith.addi %4, %c20_i32_136 : i32
    %c3_i32_137 = arith.constant 3 : i32
    %247 = arith.addi %246, %c3_i32_137 : i32
    %248 = arith.index_cast %247 : i32 to index
    %249 = memref.load %arg1[%248] : memref<32xi32, #tpu.memory_space<smem>>
    %c0_i32_138 = arith.constant 0 : i32
    %c9999_i32_139 = arith.constant 9999 : i32
    %250 = arith.maxsi %c0_i32_138, %249 : i32
    %251 = arith.minsi %c9999_i32_139, %250 : i32
    %252 = arith.index_cast %251 : i32 to index
    %c0_140 = arith.constant 0 : index
    %253 = vector.load %arg2[%252, %c0_140] : memref<10000x32xf32, #tpu.memory_space<vmem>>, vector<1x32xf32>
    %c24_i32_141 = arith.constant 24 : i32
    %254 = arith.addi %4, %c24_i32_141 : i32
    %c3_i32_142 = arith.constant 3 : i32
    %255 = arith.addi %254, %c3_i32_142 : i32
    %256 = arith.index_cast %255 : i32 to index
    %257 = memref.load %arg1[%256] : memref<32xi32, #tpu.memory_space<smem>>
    %c0_i32_143 = arith.constant 0 : i32
    %c9999_i32_144 = arith.constant 9999 : i32
    %258 = arith.maxsi %c0_i32_143, %257 : i32
    %259 = arith.minsi %c9999_i32_144, %258 : i32
    %260 = arith.index_cast %259 : i32 to index
    %c0_145 = arith.constant 0 : index
    %261 = vector.load %arg2[%260, %c0_145] : memref<10000x32xf32, #tpu.memory_space<vmem>>, vector<1x32xf32>
    %c28_i32_146 = arith.constant 28 : i32
    %262 = arith.addi %4, %c28_i32_146 : i32
    %c3_i32_147 = arith.constant 3 : i32
    %263 = arith.addi %262, %c3_i32_147 : i32
    %264 = arith.index_cast %263 : i32 to index
    %265 = memref.load %arg1[%264] : memref<32xi32, #tpu.memory_space<smem>>
    %c0_i32_148 = arith.constant 0 : i32
    %c9999_i32_149 = arith.constant 9999 : i32
    %266 = arith.maxsi %c0_i32_148, %265 : i32
    %267 = arith.minsi %c9999_i32_149, %266 : i32
    %268 = arith.index_cast %267 : i32 to index
    %c0_150 = arith.constant 0 : index
    %269 = vector.load %arg2[%268, %c0_150] : memref<10000x32xf32, #tpu.memory_space<vmem>>, vector<1x32xf32>
    %270 = tpu.concatenate %213, %221, %229, %237, %245, %253, %261, %269 in 0 : vector<1x32xf32>, vector<1x32xf32>, vector<1x32xf32>, vector<1x32xf32>, vector<1x32xf32>, vector<1x32xf32>, vector<1x32xf32>, vector<1x32xf32> -> vector<8x32xf32>
    %271 = arith.index_cast %2 : i32 to index
    %c96 = arith.constant 96 : index
    %272 = vector.load %arg3[%271, %c96] : memref<8x128xf32, #tpu.memory_space<vmem>>, vector<8x32xf32>
    tpu.vector_store %arg3[%271, %c96], %270 {strides = array<i32>} : memref<8x128xf32, #tpu.memory_space<vmem>>, vector<8x32xf32>,
    %c1_i32_151 = arith.constant 1 : i32
    return
  }
  func.func @transform_0(%arg0: i32, %arg1: memref<32xi32, #tpu.memory_space<smem>>) -> (i32, i32) {
    %c0_i32 = arith.constant 0 : i32
    %c0_i32_0 = arith.constant 0 : i32
    %c0_i32_1 = arith.constant 0 : i32
    return %c0_i32, %c0_i32_0 : i32, i32
  }
  func.func @transform_1(%arg0: i32, %arg1: memref<32xi32, #tpu.memory_space<smem>>) -> (i32, i32) {
    %c0_i32 = arith.constant 0 : i32
    %c0_i32_0 = arith.constant 0 : i32
    return %arg0, %c0_i32 : i32, i32
  }
}

</mosaic_0001>

<llo_original>
// kernel: tpu_custom_call.1
$region0: #{tpu_custom_call.1}
  #allocation0 [shape = 'u32[]', space=smem, size = 0x4, offset = 0x4, fixed_abs, tag = 'smem constant byte address 0x4 - core index']
  #allocation1 [shape = 'u32[144,128]{1,0:T(1,128)}', space=vmem, size = 0x12000, scoped, tag = 'internal scratch']
  #allocation2 [shape = 's32[1]{0}', space=sflag, size = 0x4, scoped, tag = 'scoped memory for tpu_custom_call.1']
  #allocation3 [shape = 'u8[512]{0}', space=smem, size = 0x200, scoped, tag = 'prefetched SMEM operand 0']
  %s0 = inlined_call_operand.vmem [shape: s32[32], index: 0, kind: input, shape index: {}]
  %s1 = inlined_call_operand.vmem [shape: f32[10000,32], index: 1, kind: input, shape index: {}]
  %s2 = inlined_call_operand.hbm [shape: f32[8,128], index: 2, kind: output, shape index: {}]
  %s3 = sld [smem:[#allocation0]]
  $region14: #{tpu_custom_call.1} parent=0
    _
  %s5 = ssub.s32 1, %s3
  %s6 = scalar_select 0, %s5, %s3
  %s7 = sshll.u32 %s0, 4
  %s8 = int_to_ptr.vmem [resolvable:$true] %s7
  %10 = dma.vmem_to_smem %s8, 16, [#allocation3], [#allocation2]
  %11 = dma.done [#allocation2], 16
  %12 = sfence
  $region1: #{tpu_custom_call.1} parent=0
    #allocation4 [shape = 'u8[4096]{0}', space=vmem, size = 0x1000, scoped, tag = 'output window, operand 0, single buffered']
    #allocation5 [shape = 's32[1]{0}', space=sflag, size = 0x4, scoped, tag = 'scoped memory for tpu_custom_call.1']
    %13 = vsyncpa [#allocation5], 0
    // Predicated region
    $region2: #{tpu_custom_call.1} parent=1 // pred_check
      _
    $region3: #{tpu_custom_call.1} parent=1 // pred_check_branch
      %15 = sbr.rel (0) target = $region5
    $region4: #{tpu_custom_call.1} parent=1 // pred_region
      _
    $region5: #{tpu_custom_call.1} parent=1 // pred_fallthru
      _
    %s16 = smul.u32 0, 32
    %s17 = sld [smem:[#allocation3 + %s16]]
    %p18 = scmp.gt.s32.totalorder %s17, 0
    %s19 = scalar_select %p18, %s17, 0
    %p20 = scmp.lt.s32.totalorder %s19, 9999
    %s21 = scalar_select %p20, %s19, 9999
    %s22 = scalar_lea.vmem %s1, %s21
    %v23 = vld [vmem:[%s22] sm:$0x1]
    %s24 = sadd.s32 %s16, 4
    %s25 = sld [smem:[#allocation3 + %s24]]
    %p26 = scmp.gt.s32.totalorder %s25, 0
    %s27 = scalar_select %p26, %s25, 0
    %p28 = scmp.lt.s32.totalorder %s27, 9999
    %s29 = scalar_select %p28, %s27, 9999
    %s30 = scalar_lea.vmem %s1, %s29
    %v31 = vld [vmem:[%s30] sm:$0x1]
    %s32 = sadd.s32 %s16, 8
    %s33 = sld [smem:[#allocation3 + %s32]]
    %p34 = scmp.gt.s32.totalorder %s33, 0
    %s35 = scalar_select %p34, %s33, 0
    %p36 = scmp.lt.s32.totalorder %s35, 9999
    %s37 = scalar_select %p36, %s35, 9999
    %s38 = scalar_lea.vmem %s1, %s37
    %v39 = vld [vmem:[%s38] sm:$0x1]
    %s40 = sadd.s32 %s16, 12
    %s41 = sld [smem:[#allocation3 + %s40]]
    %p42 = scmp.gt.s32.totalorder %s41, 0
    %s43 = scalar_select %p42, %s41, 0
    %p44 = scmp.lt.s32.totalorder %s43, 9999
    %s45 = scalar_select %p44, %s43, 9999
    %s46 = scalar_lea.vmem %s1, %s45
    %v47 = vld [vmem:[%s46] sm:$0x1]
    %s48 = sadd.s32 %s16, 16
    %s49 = sld [smem:[#allocation3 + %s48]]
    %p50 = scmp.gt.s32.totalorder %s49, 0
    %s51 = scalar_select %p50, %s49, 0
    %p52 = scmp.lt.s32.totalorder %s51, 9999
    %s53 = scalar_select %p52, %s51, 9999
    %s54 = scalar_lea.vmem %s1, %s53
    %v55 = vld [vmem:[%s54] sm:$0x1]
    %s56 = sadd.s32 %s16, 20
    %s57 = sld [smem:[#allocation3 + %s56]]
    %p58 = scmp.gt.s32.totalorder %s57, 0
    %s59 = scalar_select %p58, %s57, 0
    %p60 = scmp.lt.s32.totalorder %s59, 9999
    %s61 = scalar_select %p60, %s59, 9999
    %s62 = scalar_lea.vmem %s1, %s61
    %v63 = vld [vmem:[%s62] sm:$0x1]
    %s64 = sadd.s32 %s16, 24
    %s65 = sld [smem:[#allocation3 + %s64]]
    %p66 = scmp.gt.s32.totalorder %s65, 0
    %s67 = scalar_select %p66, %s65, 0
    %p68 = scmp.lt.s32.totalorder %s67, 9999
    %s69 = scalar_select %p68, %s67, 9999
    %s70 = scalar_lea.vmem %s1, %s69
    %v71 = vld [vmem:[%s70] sm:$0x1]
    %s72 = sadd.s32 %s16, 28
    %s73 = sld [smem:[#allocation3 + %s72]]
    %p74 = scmp.gt.s32.totalorder %s73, 0
    %s75 = scalar_select %p74, %s73, 0
    %p76 = scmp.lt.s32.totalorder %s75, 9999
    %s77 = scalar_select %p76, %s75, 9999
    %s78 = scalar_lea.vmem %s1, %s77
    %v79 = vld [vmem:[%s78] sm:$0x1]
    %v81 = vrot.slane %v31, 7
    %v84 = vrot.slane %v39, 6
    %v87 = vrot.slane %v47, 5
    %v90 = vrot.slane %v55, 4
    %v93 = vrot.slane %v63, 3
    %v96 = vrot.slane %v71, 2
    %v99 = vrot.slane %v79, 1
    %vm101 = vcmask 1040384
    %v102 = vsel %vm101, %v23, %v81
    %vm103 = vcmask 1041408
    %v104 = vsel %vm103, %v102, %v84
    %vm105 = vcmask 1042432
    %v106 = vsel %vm105, %v104, %v87
    %vm107 = vcmask 1043456
    %v108 = vsel %vm107, %v106, %v90
    %vm109 = vcmask 1044480
    %v110 = vsel %vm109, %v108, %v93
    %vm111 = vcmask 1045504
    %v112 = vsel %vm111, %v110, %v96
    %vm113 = vcmask 1046528
    %v114 = vsel %vm113, %v112, %v99
    %vm115 = vcmask 261120
    %116 = vst.msk [vmem:[#allocation4] sm:$0xff] %vm115, %v114
    %s117 = sadd.s32 %s16, 1
    %s118 = sld [smem:[#allocation3 + %s117]]
    %p119 = scmp.gt.s32.totalorder %s118, 0
    %s120 = scalar_select %p119, %s118, 0
    %p121 = scmp.lt.s32.totalorder %s120, 9999
    %s122 = scalar_select %p121, %s120, 9999
    %s123 = scalar_lea.vmem %s1, %s122
    %v124 = vld [vmem:[%s123] sm:$0x1]
    %s125 = sadd.s32 %s16, 5
    %s126 = sld [smem:[#allocation3 + %s125]]
    %p127 = scmp.gt.s32.totalorder %s126, 0
    %s128 = scalar_select %p127, %s126, 0
    %p129 = scmp.lt.s32.totalorder %s128, 9999
    %s130 = scalar_select %p129, %s128, 9999
    %s131 = scalar_lea.vmem %s1, %s130
    %v132 = vld [vmem:[%s131] sm:$0x1]
    %s133 = sadd.s32 %s16, 9
    %s134 = sld [smem:[#allocation3 + %s133]]
    %p135 = scmp.gt.s32.totalorder %s134, 0
    %s136 = scalar_select %p135, %s134, 0
    %p137 = scmp.lt.s32.totalorder %s136, 9999
    %s138 = scalar_select %p137, %s136, 9999
    %s139 = scalar_lea.vmem %s1, %s138
    %v140 = vld [vmem:[%s139] sm:$0x1]
    %s141 = sadd.s32 %s16, 13
    %s142 = sld [smem:[#allocation3 + %s141]]
    %p143 = scmp.gt.s32.totalorder %s142, 0
    %s144 = scalar_select %p143, %s142, 0
    %p145 = scmp.lt.s32.totalorder %s144, 9999
    %s146 = scalar_select %p145, %s144, 9999
    %s147 = scalar_lea.vmem %s1, %s146
    %v148 = vld [vmem:[%s147] sm:$0x1]
    %s149 = sadd.s32 %s16, 17
    %s150 = sld [smem:[#allocation3 + %s149]]
    %p151 = scmp.gt.s32.totalorder %s150, 0
    %s152 = scalar_select %p151, %s150, 0
    %p153 = scmp.lt.s32.totalorder %s152, 9999
    %s154 = scalar_select %p153, %s152, 9999
    %s155 = scalar_lea.vmem %s1, %s154
    %v156 = vld [vmem:[%s155] sm:$0x1]
    %s157 = sadd.s32 %s16, 21
    %s158 = sld [smem:[#allocation3 + %s157]]
    %p159 = scmp.gt.s32.totalorder %s158, 0
    %s160 = scalar_select %p159, %s158, 0
    %p161 = scmp.lt.s32.totalorder %s160, 9999
    %s162 = scalar_select %p161, %s160, 9999
    %s163 = scalar_lea.vmem %s1, %s162
    %v164 = vld [vmem:[%s163] sm:$0x1]
    %s165 = sadd.s32 %s16, 25
    %s166 = sld [smem:[#allocation3 + %s165]]
    %p167 = scmp.gt.s32.totalorder %s166, 0
    %s168 = scalar_select %p167, %s166, 0
    %p169 = scmp.lt.s32.totalorder %s168, 9999
    %s170 = scalar_select %p169, %s168, 9999
    %s171 = scalar_lea.vmem %s1, %s170
    %v172 = vld [vmem:[%s171] sm:$0x1]
    %s173 = sadd.s32 %s16, 29
    %s174 = sld [smem:[#allocation3 + %s173]]
    %p175 = scmp.gt.s32.totalorder %s174, 0
    %s176 = scalar_select %p175, %s174, 0
    %p177 = scmp.lt.s32.totalorder %s176, 9999
    %s178 = scalar_select %p177, %s176, 9999
    %s179 = scalar_lea.vmem %s1, %s178
    %v180 = vld [vmem:[%s179] sm:$0x1]
    %v182 = vrot.slane %v132, 7
    %v185 = vrot.slane %v140, 6
    %v188 = vrot.slane %v148, 5
    %v191 = vrot.slane %v156, 4
    %v194 = vrot.slane %v164, 3
    %v197 = vrot.slane %v172, 2
    %v200 = vrot.slane %v180, 1
    %v202 = vsel %vm101, %v124, %v182
    %v203 = vsel %vm103, %v202, %v185
    %v204 = vsel %vm105, %v203, %v188
    %v205 = vsel %vm107, %v204, %v191
    %v206 = vsel %vm109, %v205, %v194
    %v207 = vsel %vm111, %v206, %v197
    %v208 = vsel %vm113, %v207, %v200
    %210 = vrot.lane.b32.xlu0 %v208, 32
    %v211 = vpop.permute.xlu0 %210
    %vm213 = vcmask 523520
    %214 = vst.msk [vmem:[#allocation4] sm:$0xff] %vm213, %v211
    %s215 = sadd.s32 %s16, 2
    %s216 = sld [smem:[#allocation3 + %s215]]
    %p217 = scmp.gt.s32.totalorder %s216, 0
    %s218 = scalar_select %p217, %s216, 0
    %p219 = scmp.lt.s32.totalorder %s218, 9999
    %s220 = scalar_select %p219, %s218, 9999
    %s221 = scalar_lea.vmem %s1, %s220
    %v222 = vld [vmem:[%s221] sm:$0x1]
    %s223 = sadd.s32 %s16, 6
    %s224 = sld [smem:[#allocation3 + %s223]]
    %p225 = scmp.gt.s32.totalorder %s224, 0
    %s226 = scalar_select %p225, %s224, 0
    %p227 = scmp.lt.s32.totalorder %s226, 9999
    %s228 = scalar_select %p227, %s226, 9999
    %s229 = scalar_lea.vmem %s1, %s228
    %v230 = vld [vmem:[%s229] sm:$0x1]
    %s231 = sadd.s32 %s16, 10
    %s232 = sld [smem:[#allocation3 + %s231]]
    %p233 = scmp.gt.s32.totalorder %s232, 0
    %s234 = scalar_select %p233, %s232, 0
    %p235 = scmp.lt.s32.totalorder %s234, 9999
    %s236 = scalar_select %p235, %s234, 9999
    %s237 = scalar_lea.vmem %s1, %s236
    %v238 = vld [vmem:[%s237] sm:$0x1]
    %s239 = sadd.s32 %s16, 14
    %s240 = sld [smem:[#allocation3 + %s239]]
    %p241 = scmp.gt.s32.totalorder %s240, 0
    %s242 = scalar_select %p241, %s240, 0
    %p243 = scmp.lt.s32.totalorder %s242, 9999
    %s244 = scalar_select %p243, %s242, 9999
    %s245 = scalar_lea.vmem %s1, %s244
    %v246 = vld [vmem:[%s245] sm:$0x1]
    %s247 = sadd.s32 %s16, 18
    %s248 = sld [smem:[#allocation3 + %s247]]
    %p249 = scmp.gt.s32.totalorder %s248, 0
    %s250 = scalar_select %p249, %s248, 0
    %p251 = scmp.lt.s32.totalorder %s250, 9999
    %s252 = scalar_select %p251, %s250, 9999
    %s253 = scalar_lea.vmem %s1, %s252
    %v254 = vld [vmem:[%s253] sm:$0x1]
    %s255 = sadd.s32 %s16, 22
    %s256 = sld [smem:[#allocation3 + %s255]]
    %p257 = scmp.gt.s32.totalorder %s256, 0
    %s258 = scalar_select %p257, %s256, 0
    %p259 = scmp.lt.s32.totalorder %s258, 9999
    %s260 = scalar_select %p259, %s258, 9999
    %s261 = scalar_lea.vmem %s1, %s260
    %v262 = vld [vmem:[%s261] sm:$0x1]
    %s263 = sadd.s32 %s16, 26
    %s264 = sld [smem:[#allocation3 + %s263]]
    %p265 = scmp.gt.s32.totalorder %s264, 0
    %s266 = scalar_select %p265, %s264, 0
    %p267 = scmp.lt.s32.totalorder %s266, 9999
    %s268 = scalar_select %p267, %s266, 9999
    %s269 = scalar_lea.vmem %s1, %s268
    %v270 = vld [vmem:[%s269] sm:$0x1]
    %s271 = sadd.s32 %s16, 30
    %s272 = sld [smem:[#allocation3 + %s271]]
    %p273 = scmp.gt.s32.totalorder %s272, 0
    %s274 = scalar_select %p273, %s272, 0
    %p275 = scmp.lt.s32.totalorder %s274, 9999
    %s276 = scalar_select %p275, %s274, 9999
    %s277 = scalar_lea.vmem %s1, %s276
    %v278 = vld [vmem:[%s277] sm:$0x1]
    %v280 = vrot.slane %v230, 7
    %v283 = vrot.slane %v238, 6
    %v286 = vrot.slane %v246, 5
    %v289 = vrot.slane %v254, 4
    %v292 = vrot.slane %v262, 3
    %v295 = vrot.slane %v270, 2
    %v298 = vrot.slane %v278, 1
    %v300 = vsel %vm101, %v222, %v280
    %v301 = vsel %vm103, %v300, %v283
    %v302 = vsel %vm105, %v301, %v286
    %v303 = vsel %vm107, %v302, %v289
    %v304 = vsel %vm109, %v303, %v292
    %v305 = vsel %vm111, %v304, %v295
    %v306 = vsel %vm113, %v305, %v298
    %308 = vrot.lane.b32.xlu0 %v306, 64
    %v309 = vpop.permute.xlu0 %308
    %vm311 = vcmask 785920
    %312 = vst.msk [vmem:[#allocation4] sm:$0xff] %vm311, %v309
    %s313 = sadd.s32 %s16, 3
    %s314 = sld [smem:[#allocation3 + %s313]]
    %p315 = scmp.gt.s32.totalorder %s314, 0
    %s316 = scalar_select %p315, %s314, 0
    %p317 = scmp.lt.s32.totalorder %s316, 9999
    %s318 = scalar_select %p317, %s316, 9999
    %s319 = scalar_lea.vmem %s1, %s318
    %v320 = vld [vmem:[%s319] sm:$0x1]
    %s321 = sadd.s32 %s16, 7
    %s322 = sld [smem:[#allocation3 + %s321]]
    %p323 = scmp.gt.s32.totalorder %s322, 0
    %s324 = scalar_select %p323, %s322, 0
    %p325 = scmp.lt.s32.totalorder %s324, 9999
    %s326 = scalar_select %p325, %s324, 9999
    %s327 = scalar_lea.vmem %s1, %s326
    %v328 = vld [vmem:[%s327] sm:$0x1]
    %s329 = sadd.s32 %s16, 11
    %s330 = sld [smem:[#allocation3 + %s329]]
    %p331 = scmp.gt.s32.totalorder %s330, 0
    %s332 = scalar_select %p331, %s330, 0
    %p333 = scmp.lt.s32.totalorder %s332, 9999
    %s334 = scalar_select %p333, %s332, 9999
    %s335 = scalar_lea.vmem %s1, %s334
    %v336 = vld [vmem:[%s335] sm:$0x1]
    %s337 = sadd.s32 %s16, 15
    %s338 = sld [smem:[#allocation3 + %s337]]
    %p339 = scmp.gt.s32.totalorder %s338, 0
    %s340 = scalar_select %p339, %s338, 0
    %p341 = scmp.lt.s32.totalorder %s340, 9999
    %s342 = scalar_select %p341, %s340, 9999
    %s343 = scalar_lea.vmem %s1, %s342
    %v344 = vld [vmem:[%s343] sm:$0x1]
    %s345 = sadd.s32 %s16, 19
    %s346 = sld [smem:[#allocation3 + %s345]]
    %p347 = scmp.gt.s32.totalorder %s346, 0
    %s348 = scalar_select %p347, %s346, 0
    %p349 = scmp.lt.s32.totalorder %s348, 9999
    %s350 = scalar_select %p349, %s348, 9999
    %s351 = scalar_lea.vmem %s1, %s350
    %v352 = vld [vmem:[%s351] sm:$0x1]
    %s353 = sadd.s32 %s16, 23
    %s354 = sld [smem:[#allocation3 + %s353]]
    %p355 = scmp.gt.s32.totalorder %s354, 0
    %s356 = scalar_select %p355, %s354, 0
    %p357 = scmp.lt.s32.totalorder %s356, 9999
    %s358 = scalar_select %p357, %s356, 9999
    %s359 = scalar_lea.vmem %s1, %s358
    %v360 = vld [vmem:[%s359] sm:$0x1]
    %s361 = sadd.s32 %s16, 27
    %s362 = sld [smem:[#allocation3 + %s361]]
    %p363 = scmp.gt.s32.totalorder %s362, 0
    %s364 = scalar_select %p363, %s362, 0
    %p365 = scmp.lt.s32.totalorder %s364, 9999
    %s366 = scalar_select %p365, %s364, 9999
    %s367 = scalar_lea.vmem %s1, %s366
    %v368 = vld [vmem:[%s367] sm:$0x1]
    %s369 = sadd.s32 %s16, 31
    %s370 = sld [smem:[#allocation3 + %s369]]
    %p371 = scmp.gt.s32.totalorder %s370, 0
    %s372 = scalar_select %p371, %s370, 0
    %p373 = scmp.lt.s32.totalorder %s372, 9999
    %s374 = scalar_select %p373, %s372, 9999
    %s375 = scalar_lea.vmem %s1, %s374
    %v376 = vld [vmem:[%s375] sm:$0x1]
    %v378 = vrot.slane %v328, 7
    %v381 = vrot.slane %v336, 6
    %v384 = vrot.slane %v344, 5
    %v387 = vrot.slane %v352, 4
    %v390 = vrot.slane %v360, 3
    %v393 = vrot.slane %v368, 2
    %v396 = vrot.slane %v376, 1
    %v398 = vsel %vm101, %v320, %v378
    %v399 = vsel %vm103, %v398, %v381
    %v400 = vsel %vm105, %v399, %v384
    %v401 = vsel %vm107, %v400, %v387
    %v402 = vsel %vm109, %v401, %v390
    %v403 = vsel %vm111, %v402, %v393
    %v404 = vsel %vm113, %v403, %v396
    %406 = vrot.lane.b32.xlu0 %v404, 96
    %v407 = vpop.permute.xlu0 %406
    %vm409 = vcmask 1048320
    %410 = vst.msk [vmem:[#allocation4] sm:$0xff] %vm409, %v407
    // Predicated region
    $region6: #{tpu_custom_call.1} parent=1 // pred_check
      _
    $region7: #{tpu_custom_call.1} parent=1 // pred_check_branch
      %412 = sbr.rel (0) target = $region9
    $region8: #{tpu_custom_call.1} parent=1 // pred_region
      %s414 = ssub.s32 128, 128
      %415 = vsyncadd [#allocation5], %s414
      %s417 = sshll.u32 [#allocation4], 4
      %s418 = int_to_ptr.vmem [resolvable:$true] %s417
      %420 = dma.vmem_to_hbm [thread:$0]  %s418, 128, %s2, [#allocation5]
    $region9: #{tpu_custom_call.1} parent=1 // pred_fallthru
      _
    // Predicated region
    $region10: #{tpu_custom_call.1} parent=1 // pred_check
      _
    $region11: #{tpu_custom_call.1} parent=1 // pred_check_branch
      %422 = sbr.rel (0) target = $region13
    $region12: #{tpu_custom_call.1} parent=1 // pred_region
      %423 = dma.done [#allocation5], 128
    $region13: #{tpu_custom_call.1} parent=1 // pred_fallthru
      _
    %424 = vsyncpa [#allocation5], 1

</llo_original>
